<compile_context>
chip_gen: v5e
topology: v5e:2x2
jax: 0.10.0
libtpu: 0.0.40
codegen_flags: <defaults>
</compile_context>

<pallas_src>
import jax
import jax.numpy as jnp
from jax.experimental import pallas as pl
from jax.experimental.pallas import tpu as pltpu

# ----------------------------- dimensions -----------------------------------
BATCH = 2
N_PTS = 128          # flattened spatial/temporal points per batch element
INPUT_DIM = 4        # 3d + t coordinates
DESIGN_DIM = 8
HIDDEN = 32
OUT_DIM = 32         # trunc.out_dim (== branch output dim)
FIELD_DIM = 8
INFER_HID = 32
INFER_DIM = 8

# ---- activation slab layout (rows on sublanes, points on lanes) ------------
A_COORDS = 0                       # rows 0..3   : coords^T
A_DESIGN = INPUT_DIM               # rows 4..11  : design (broadcast over points)^T
A_ROWS = INPUT_DIM + DESIGN_DIM    # 12

# ---- weight slab layout (pre-transposed, bias folded in as column BIAS_COL) ----
R_W1 = 0                           # block-diag [trunc W1^T ; branch W1^T] : (64, 12)
C1 = INPUT_DIM + DESIGN_DIM        # 12
R_W2 = R_W1 + 2 * HIDDEN           # block-diag [trunc W2^T ; branch W2^T] : (64, 64)
C2 = 2 * HIDDEN                    # 64
R_WC = R_W2 + 2 * OUT_DIM          # [field W | infer W1]^T : (40, 32)
CC = OUT_DIM                       # 32
R_IW2 = R_WC + FIELD_DIM + INFER_HID   # infer W2^T : (8, 32)
CI = INFER_HID                     # 32
SLAB_ROWS = R_IW2 + INFER_DIM      # 176 (all offsets 8-aligned)
BIAS_COL = C2                      # 64 = max weight width -> bias lives in col 64
SLAB_COLS = BIAS_COL + 1           # 65


# ----------------------------- Pallas kernel ---------------------------------
def _predictor_kernel(act_ref, w_ref, out_ref):
    dot = lambda a, b: jnp.dot(a, b, preferred_element_type=jnp.float32)

    act = act_ref[...]                                       # (12, P)

    # layer 1 (block-diagonal trunc | branch), tanh          -> (64, P)
    h1 = jnp.tanh(dot(w_ref[R_W1:R_W1 + 2 * HIDDEN, :C1], act)
                  + w_ref[R_W1:R_W1 + 2 * HIDDEN, BIAS_COL:BIAS_COL + 1])

    # layer 2 (block-diagonal trunc | branch), linear         -> (64, P)
    z2 = (dot(w_ref[R_W2:R_W2 + 2 * OUT_DIM, :C2], h1)
          + w_ref[R_W2:R_W2 + 2 * OUT_DIM, BIAS_COL:BIAS_COL + 1])

    # feature = (branch, broadcast over points) * trunc       -> (32, P)
    feat = z2[:OUT_DIM, :] * z2[OUT_DIM:, :]

    # fused field_net + infer_net first layer (shared LHS)    -> (40, P)
    z = (dot(w_ref[R_WC:R_WC + FIELD_DIM + INFER_HID, :CC], feat)
         + w_ref[R_WC:R_WC + FIELD_DIM + INFER_HID, BIAS_COL:BIAS_COL + 1])

    out_ref[0:FIELD_DIM, :] = z[:FIELD_DIM, :]               # F^T : (8, P), lane-dense

    hy = jnp.tanh(z[FIELD_DIM:, :])                          # (32, P)
    out_ref[FIELD_DIM:FIELD_DIM + INFER_DIM, :] = (
        dot(w_ref[R_IW2:R_IW2 + INFER_DIM, :CI], hy)
        + w_ref[R_IW2:R_IW2 + INFER_DIM, BIAS_COL:BIAS_COL + 1])   # Y^T : (8, P)


# ----------------------------- packing (one-time, hoisted) -------------------
def pack_params(params):
    """Pack all weights (pre-transposed, block-diagonal where fused) and all
    biases into a single (176, 65) f32 slab.  Call ONCE at parameter-init time."""
    (bw1, bb1, bw2, bb2, tw1, tb1, tw2, tb2, fw, fb, iw1, ib1, iw2, ib2) = params
    w = jnp.zeros((SLAB_ROWS, SLAB_COLS), jnp.float32)
    # layer 1 block-diagonal
    w = w.at[R_W1:R_W1 + HIDDEN, 0:INPUT_DIM].set(tw1.T)
    w = w.at[R_W1 + HIDDEN:R_W1 + 2 * HIDDEN, INPUT_DIM:INPUT_DIM + DESIGN_DIM].set(bw1.T)
    w = w.at[R_W1:R_W1 + HIDDEN, BIAS_COL].set(tb1.reshape(-1))
    w = w.at[R_W1 + HIDDEN:R_W1 + 2 * HIDDEN, BIAS_COL].set(bb1.reshape(-1))
    # layer 2 block-diagonal
    w = w.at[R_W2:R_W2 + OUT_DIM, 0:HIDDEN].set(tw2.T)
    w = w.at[R_W2 + OUT_DIM:R_W2 + 2 * OUT_DIM, HIDDEN:2 * HIDDEN].set(bw2.T)
    w = w.at[R_W2:R_W2 + OUT_DIM, BIAS_COL].set(tb2.reshape(-1))
    w = w.at[R_W2 + OUT_DIM:R_W2 + 2 * OUT_DIM, BIAS_COL].set(bb2.reshape(-1))
    # fused field_net + infer_net layer 1 (shared LHS 'feature')
    w = w.at[R_WC:R_WC + FIELD_DIM, 0:OUT_DIM].set(fw.T)
    w = w.at[R_WC + FIELD_DIM:R_WC + FIELD_DIM + INFER_HID, 0:OUT_DIM].set(iw1.T)
    w = w.at[R_WC:R_WC + FIELD_DIM, BIAS_COL].set(fb.reshape(-1))
    w = w.at[R_WC + FIELD_DIM:R_WC + FIELD_DIM + INFER_HID, BIAS_COL].set(ib1.reshape(-1))
    # infer layer 2
    w = w.at[R_IW2:R_IW2 + INFER_DIM, 0:INFER_HID].set(iw2.T)
    w = w.at[R_IW2:R_IW2 + INFER_DIM, BIAS_COL].set(ib2.reshape(-1))
    return w


# ----------------------------- forward (jitted) -------------------------------
@jax.jit
def predictor_forward(design, coords, w_slab):
    """Returns (F, Y) exactly as the PyTorch module does.
    `w_slab` is the pre-packed (176, 65) parameter slab from `pack_params`."""
    batch, n_pts, input_dim = coords.shape
    p_total = batch * n_pts

    # Cheap, fused layout plumbing: put the big point axis on the lane dimension,
    # and pack coords + (design broadcast over points) into ONE activation slab.
    coords_t = coords.reshape(p_total, input_dim).T                     # (4, P)
    design_t = jnp.broadcast_to(
        design[:, None, :], (batch, n_pts, design.shape[-1])
    ).reshape(p_total, design.shape[-1]).T                              # (8, P)
    act = jnp.concatenate([coords_t, design_t], axis=0)                 # (12, P)

    out = pl.pallas_call(
        _predictor_kernel,
        out_shape=jax.ShapeDtypeStruct((FIELD_DIM + INFER_DIM, p_total), jnp.float32),
        in_specs=[pl.BlockSpec(memory_space=pltpu.MemorySpace.VMEM),
                  pl.BlockSpec(memory_space=pltpu.MemorySpace.VMEM)],
        out_specs=pl.BlockSpec(memory_space=pltpu.MemorySpace.VMEM),
    )(act, w_slab)

    F = out[:FIELD_DIM, :].T.reshape(batch, n_pts, FIELD_DIM)
    Y = out[FIELD_DIM:, :].T.reshape(batch, n_pts, INFER_DIM)
    return F, Y


# ----------------------------- reference (plain JAX) -------------------------
def predictor_reference(design, coords, params):
    (bw1, bb1, bw2, bb2,
     tw1, tb1, tw2, tb2,
     fw, fb,
     iw1, ib1, iw2, ib2) = params
    B = jnp.tanh(design @ bw1 + bb1) @ bw2 + bb2              # (batch, out_dim)
    T = jnp.tanh(coords @ tw1 + tb1) @ tw2 + tb2              # (batch, N, out_dim)
    feature = B[:, None, :] * T
    F = feature @ fw + fb
    Y = jnp.tanh(feature @ iw1 + ib1) @ iw2 + ib2
    return F, Y


# ----------------------------- parameter init --------------------------------
def init_params(key):
    ks = jax.random.split(key, 7)
    scale = 0.1
    bw1 = scale * jax.random.normal(ks[0], (DESIGN_DIM, HIDDEN), jnp.float32)
    bb1 = jnp.zeros((1, HIDDEN), jnp.float32)
    bw2 = scale * jax.random.normal(ks[1], (HIDDEN, OUT_DIM), jnp.float32)
    bb2 = jnp.zeros((1, OUT_DIM), jnp.float32)
    tw1 = scale * jax.random.normal(ks[2], (INPUT_DIM, HIDDEN), jnp.float32)
    tb1 = jnp.zeros((1, HIDDEN), jnp.float32)
    tw2 = scale * jax.random.normal(ks[3], (HIDDEN, OUT_DIM), jnp.float32)
    tb2 = jnp.zeros((1, OUT_DIM), jnp.float32)
    fw = scale * jax.random.normal(ks[4], (OUT_DIM, FIELD_DIM), jnp.float32)
    fb = jnp.zeros((1, FIELD_DIM), jnp.float32)
    iw1 = scale * jax.random.normal(ks[5], (OUT_DIM, INFER_HID), jnp.float32)
    ib1 = jnp.zeros((1, INFER_HID), jnp.float32)
    iw2 = scale * jax.random.normal(ks[6], (INFER_HID, INFER_DIM), jnp.float32)
    ib2 = jnp.zeros((1, INFER_DIM), jnp.float32)
    return (bw1, bb1, bw2, bb2, tw1, tb1, tw2, tb2, fw, fb, iw1, ib1, iw2, ib2)


# ----------------------------- main -------------------------------------------
if __name__ == "__main__":
    key = jax.random.PRNGKey(0)
    kd, kc, kp = jax.random.split(key, 3)

    design = jax.random.normal(kd, (BATCH, DESIGN_DIM), jnp.float32)
    coords = jax.random.normal(kc, (BATCH, N_PTS, INPUT_DIM), jnp.float32)
    params = init_params(kp)

    # One-time packing (hoisted out of the per-call path).
    w_slab = pack_params(params)
    jax.block_until_ready(w_slab)

    F, Y = predictor_forward(design, coords, w_slab)
    jax.block_until_ready((F, Y))

    F_ref, Y_ref = predictor_reference(design, coords, params)
    assert F.shape == (BATCH, N_PTS, FIELD_DIM)
    assert Y.shape == (BATCH, N_PTS, INFER_DIM)
    assert jnp.allclose(F, F_ref, rtol=1e-4, atol=1e-4)
    assert jnp.allclose(Y, Y_ref, rtol=1e-4, atol=1e-4)

    print("KERNEL_OK")
</pallas_src>

<mosaic_0001>
module attributes {stable_mosaic.version = 11 : i64} {
  func.func @_predictor_kernel(%arg0: memref<12x256xf32, #tpu.memory_space<vmem>>, %arg1: memref<176x65xf32, #tpu.memory_space<vmem>>, %arg2: memref<16x256xf32, #tpu.memory_space<vmem>>) attributes {dimension_semantics = [], scalar_prefetch = 0 : i64, scratch_operands = 0 : i64, tpu.core_type = #tpu.core_type<tc>} {
    %c0 = arith.constant 0 : index
    %c0_0 = arith.constant 0 : index
    %0 = vector.load %arg0[%c0, %c0_0] : memref<12x256xf32, #tpu.memory_space<vmem>>, vector<12x256xf32>
    %c0_1 = arith.constant 0 : index
    %c0_2 = arith.constant 0 : index
    %1 = vector.load %arg1[%c0_1, %c0_2] : memref<176x65xf32, #tpu.memory_space<vmem>>, vector<64x12xf32>
    %cst = arith.constant dense<0.000000e+00> : vector<64x256xf32>
    %2 = tpu.matmul %1, %0, %cst {dimension_numbers = #tpu.dot_dimension_numbers<[1], [0], [0], [1], [0, 0, 1, 1], [], []>} : vector<64x12xf32>, vector<12x256xf32>, vector<64x256xf32> -> vector<64x256xf32>
    %c0_3 = arith.constant 0 : index
    %c64 = arith.constant 64 : index
    %3 = vector.load %arg1[%c0_3, %c64] : memref<176x65xf32, #tpu.memory_space<vmem>>, vector<64x1xf32>
    %4 = vector.broadcast %3 : vector<64x1xf32> to vector<64x256xf32>
    %5 = arith.addf %2, %4 : vector<64x256xf32>
    %6 = math.tanh %5 : vector<64x256xf32>
    %c64_4 = arith.constant 64 : index
    %c0_5 = arith.constant 0 : index
    %7 = vector.load %arg1[%c64_4, %c0_5] : memref<176x65xf32, #tpu.memory_space<vmem>>, vector<64x64xf32>
    %cst_6 = arith.constant dense<0.000000e+00> : vector<64x256xf32>
    %8 = tpu.matmul %7, %6, %cst_6 {dimension_numbers = #tpu.dot_dimension_numbers<[1], [0], [0], [1], [0, 0, 1, 1], [], []>} : vector<64x64xf32>, vector<64x256xf32>, vector<64x256xf32> -> vector<64x256xf32>
    %c64_7 = arith.constant 64 : index
    %c64_8 = arith.constant 64 : index
    %9 = vector.load %arg1[%c64_7, %c64_8] : memref<176x65xf32, #tpu.memory_space<vmem>>, vector<64x1xf32>
    %10 = vector.broadcast %9 : vector<64x1xf32> to vector<64x256xf32>
    %11 = arith.addf %8, %10 : vector<64x256xf32>
    %12 = vector.extract_strided_slice %11 {offsets = [0, 0], sizes = [32, 256], strides = [1, 1]} : vector<64x256xf32> to vector<32x256xf32>
    %13 = vector.extract_strided_slice %11 {offsets = [32, 0], sizes = [32, 256], strides = [1, 1]} : vector<64x256xf32> to vector<32x256xf32>
    %14 = arith.mulf %12, %13 : vector<32x256xf32>
    %c128 = arith.constant 128 : index
    %c0_9 = arith.constant 0 : index
    %15 = vector.load %arg1[%c128, %c0_9] : memref<176x65xf32, #tpu.memory_space<vmem>>, vector<40x32xf32>
    %cst_10 = arith.constant dense<0.000000e+00> : vector<40x256xf32>
    %16 = tpu.matmul %15, %14, %cst_10 {dimension_numbers = #tpu.dot_dimension_numbers<[1], [0], [0], [1], [0, 0, 1, 1], [], []>} : vector<40x32xf32>, vector<32x256xf32>, vector<40x256xf32> -> vector<40x256xf32>
    %c128_11 = arith.constant 128 : index
    %c64_12 = arith.constant 64 : index
    %17 = vector.load %arg1[%c128_11, %c64_12] : memref<176x65xf32, #tpu.memory_space<vmem>>, vector<40x1xf32>
    %18 = vector.broadcast %17 : vector<40x1xf32> to vector<40x256xf32>
    %19 = arith.addf %16, %18 : vector<40x256xf32>
    %20 = vector.extract_strided_slice %19 {offsets = [0, 0], sizes = [8, 256], strides = [1, 1]} : vector<40x256xf32> to vector<8x256xf32>
    %c0_13 = arith.constant 0 : index
    %c0_14 = arith.constant 0 : index
    %21 = vector.load %arg2[%c0_13, %c0_14] : memref<16x256xf32, #tpu.memory_space<vmem>>, vector<8x256xf32>
    tpu.vector_store %arg2[%c0_13, %c0_14], %20 {strides = array<i32>} : memref<16x256xf32, #tpu.memory_space<vmem>>, vector<8x256xf32>,
    %22 = vector.extract_strided_slice %19 {offsets = [8, 0], sizes = [32, 256], strides = [1, 1]} : vector<40x256xf32> to vector<32x256xf32>
    %23 = math.tanh %22 : vector<32x256xf32>
    %c168 = arith.constant 168 : index
    %c0_15 = arith.constant 0 : index
    %24 = vector.load %arg1[%c168, %c0_15] : memref<176x65xf32, #tpu.memory_space<vmem>>, vector<8x32xf32>
    %cst_16 = arith.constant dense<0.000000e+00> : vector<8x256xf32>
    %25 = tpu.matmul %24, %23, %cst_16 {dimension_numbers = #tpu.dot_dimension_numbers<[1], [0], [0], [1], [0, 0, 1, 1], [], []>} : vector<8x32xf32>, vector<32x256xf32>, vector<8x256xf32> -> vector<8x256xf32>
    %c168_17 = arith.constant 168 : index
    %c64_18 = arith.constant 64 : index
    %26 = vector.load %arg1[%c168_17, %c64_18] : memref<176x65xf32, #tpu.memory_space<vmem>>, vector<8x1xf32>
    %27 = vector.broadcast %26 : vector<8x1xf32> to vector<8x256xf32>
    %28 = arith.addf %25, %27 : vector<8x256xf32>
    %c8 = arith.constant 8 : index
    %c0_19 = arith.constant 0 : index
    %29 = vector.load %arg2[%c8, %c0_19] : memref<16x256xf32, #tpu.memory_space<vmem>>, vector<8x256xf32>
    tpu.vector_store %arg2[%c8, %c0_19], %28 {strides = array<i32>} : memref<16x256xf32, #tpu.memory_space<vmem>>, vector<8x256xf32>,
    return
  }
}

</mosaic_0001>

<llo_original>
// kernel: predictor_forward.1
$region0: #{predictor_forward.1}
  #allocation0 [shape = 'u32[]', space=smem, size = 0x4, offset = 0x4, fixed_abs, tag = 'smem constant byte address 0x4 - core index']
  #allocation1 [shape = 'u32[72,128]{1,0:T(1,128)}', space=vmem, size = 0x9000, scoped, tag = 'internal scratch']
  %s0 = inlined_call_operand.vmem [shape: f32[12,256], index: 0, kind: input, shape index: {}]
  %s1 = inlined_call_operand.vmem [shape: f32[176,65], index: 1, kind: input, shape index: {}]
  %s2 = inlined_call_operand.vmem [shape: f32[16,256], index: 2, kind: output, shape index: {}]
  %s3 = sld [smem:[#allocation0]]
  $region18: #{predictor_forward.1} parent=0
    _
  %s5 = ssub.s32 1, %s3
  %s6 = scalar_select 0, %s5, %s3
  // Predicated region
  $region2: #{predictor_forward.1} parent=0 // pred_check
    _
  $region3: #{predictor_forward.1} parent=0 // pred_check_branch
    %8 = sbr.rel (0) target = $region5
  $region4: #{predictor_forward.1} parent=0 // pred_region
    _
  $region5: #{predictor_forward.1} parent=0 // pred_fallthru
    _
  // Predicated region
  $region6: #{predictor_forward.1} parent=0 // pred_check
    _
  $region7: #{predictor_forward.1} parent=0 // pred_check_branch
    %10 = sbr.rel (0) target = $region9
  $region8: #{predictor_forward.1} parent=0 // pred_region
    _
  $region9: #{predictor_forward.1} parent=0 // pred_fallthru
    _
  %v11 = vld [vmem:[%s0] sm:$0xff]
  %v12 = vld [vmem:[%s0 + $0x8] sm:$0xff]
  %v13 = vld [vmem:[%s0 + $0x10] sm:$0xf]
  %v14 = vld [vmem:[%s0 + $0x18] sm:$0xf]
  %v15 = vld [vmem:[%s1] sm:$0xff]
  %v16 = vld [vmem:[%s1 + $0x8] sm:$0xff]
  %v17 = vld [vmem:[%s1 + $0x10] sm:$0xff]
  %v18 = vld [vmem:[%s1 + $0x18] sm:$0xff]
  %v19 = vld [vmem:[%s1 + $0x20] sm:$0xff]
  %v20 = vld [vmem:[%s1 + $0x28] sm:$0xff]
  %v21 = vld [vmem:[%s1 + $0x30] sm:$0xff]
  %v22 = vld [vmem:[%s1 + $0x38] sm:$0xff]
  %24 = vset.pattern.permute.xlu0 64
  %25 = vperm.xlu0 %24, %v15
  %v26 = vpop.permute.xlu0 %25
  %29 = vset.pattern.permute.xlu0 64
  %30 = vperm.xlu0 %29, %v16
  %v31 = vpop.permute.xlu0 %30
  %34 = vset.pattern.permute.xlu0 64
  %35 = vperm.xlu0 %34, %v17
  %v36 = vpop.permute.xlu0 %35
  %39 = vset.pattern.permute.xlu0 64
  %40 = vperm.xlu0 %39, %v18
  %v41 = vpop.permute.xlu0 %40
  %44 = vset.pattern.permute.xlu0 64
  %45 = vperm.xlu0 %44, %v19
  %v46 = vpop.permute.xlu0 %45
  %49 = vset.pattern.permute.xlu0 64
  %50 = vperm.xlu0 %49, %v20
  %v51 = vpop.permute.xlu0 %50
  %54 = vset.pattern.permute.xlu0 64
  %55 = vperm.xlu0 %54, %v21
  %v56 = vpop.permute.xlu0 %55
  %59 = vset.pattern.permute.xlu0 64
  %60 = vperm.xlu0 %59, %v22
  %v61 = vpop.permute.xlu0 %60
  %vm63 = vcmask 97280
  %v64 = vsel %vm63, %v15, 0
  %v66 = vsel %vm63, %v16, 0
  %v68 = vsel %vm63, %v17, 0
  %v70 = vsel %vm63, %v18, 0
  %v72 = vsel %vm63, %v19, 0
  %v74 = vsel %vm63, %v20, 0
  %v76 = vsel %vm63, %v21, 0
  %v78 = vsel %vm63, %v22, 0
  %vm80 = vcmask 1043456
  %v82 = vsel %vm80, %v13, 0
  %v85 = vsel %vm80, %v14, 0
  %87 = vmatpush.msra.mxu0 0.0
  %88 = vmatpush.msra.mxu0 0.0
  %89 = vmatpush.msra.mxu0 0.0
  %90 = vmatpush.msra.mxu0 0.0
  %91 = vmatpush.msra.mxu0 0.0
  %92 = vmatpush.msra.mxu0 0.0
  %93 = vmatpush.msra.mxu0 0.0
  %94 = vmatpush.msra.mxu0 0.0
  %95 = vmatpush.msra.mxu0 0.0
  %96 = vmatpush.msra.mxu0 0.0
  %97 = vmatpush.msra.mxu0 0.0
  %98 = vmatpush.msra.mxu0 0.0
  %99 = vmatpush.msra.mxu0 0.0
  %100 = vmatpush.msra.mxu0 0.0
  %101 = vmatpush.msra.mxu0 %v82
  %102 = vmatpush.msra.mxu0 %v11
  %103 = vmatmul.f32.gmra.mxu0 %v64
  %v104 = vpop.f32.mrf.mxu0
  %v105 = vadd.f32 %v26, %v104
  %106 = vmatmul.f32.gmra.mxu0 %v66
  %v107 = vpop.f32.mrf.mxu0
  %v108 = vadd.f32 %v31, %v107
  %109 = vmatmul.f32.gmra.mxu0 %v68
  %v110 = vpop.f32.mrf.mxu0
  %v111 = vadd.f32 %v36, %v110
  %112 = vmatmul.f32.gmra.mxu0 %v70
  %v113 = vpop.f32.mrf.mxu0
  %v114 = vadd.f32 %v41, %v113
  %115 = vmatmul.f32.gmra.mxu0 %v72
  %v116 = vpop.f32.mrf.mxu0
  %v117 = vadd.f32 %v46, %v116
  %118 = vmatmul.f32.gmra.mxu0 %v74
  %v119 = vpop.f32.mrf.mxu0
  %v120 = vadd.f32 %v51, %v119
  %121 = vmatmul.f32.gmra.mxu0 %v76
  %v122 = vpop.f32.mrf.mxu0
  %v123 = vadd.f32 %v56, %v122
  %124 = vmatmul.f32.gmra.mxu0 %v78
  %v125 = vpop.f32.mrf.mxu0
  %v126 = vadd.f32 %v61, %v125
  %127 = vdwg.mxu0
  %128 = vmatpush.msra.mxu0 0.0
  %129 = vmatpush.msra.mxu0 0.0
  %130 = vmatpush.msra.mxu0 0.0
  %131 = vmatpush.msra.mxu0 0.0
  %132 = vmatpush.msra.mxu0 0.0
  %133 = vmatpush.msra.mxu0 0.0
  %134 = vmatpush.msra.mxu0 0.0
  %135 = vmatpush.msra.mxu0 0.0
  %136 = vmatpush.msra.mxu0 0.0
  %137 = vmatpush.msra.mxu0 0.0
  %138 = vmatpush.msra.mxu0 0.0
  %139 = vmatpush.msra.mxu0 0.0
  %140 = vmatpush.msra.mxu0 0.0
  %141 = vmatpush.msra.mxu0 0.0
  %142 = vmatpush.msra.mxu0 %v85
  %143 = vmatpush.msra.mxu0 %v12
  %144 = vmatmul.f32.gmra.mxu0 %v64
  %v145 = vpop.f32.mrf.mxu0
  %v146 = vadd.f32 %v26, %v145
  %147 = vmatmul.f32.gmra.mxu0 %v66
  %v148 = vpop.f32.mrf.mxu0
  %v149 = vadd.f32 %v31, %v148
  %150 = vmatmul.f32.gmra.mxu0 %v68
  %v151 = vpop.f32.mrf.mxu0
  %v152 = vadd.f32 %v36, %v151
  %153 = vmatmul.f32.gmra.mxu0 %v70
  %v154 = vpop.f32.mrf.mxu0
  %v155 = vadd.f32 %v41, %v154
  %156 = vmatmul.f32.gmra.mxu0 %v72
  %v157 = vpop.f32.mrf.mxu0
  %v158 = vadd.f32 %v46, %v157
  %159 = vmatmul.f32.gmra.mxu0 %v74
  %v160 = vpop.f32.mrf.mxu0
  %v161 = vadd.f32 %v51, %v160
  %162 = vmatmul.f32.gmra.mxu0 %v76
  %v163 = vpop.f32.mrf.mxu0
  %v164 = vadd.f32 %v56, %v163
  %165 = vmatmul.f32.gmra.mxu0 %v78
  %v166 = vpop.f32.mrf.mxu0
  %v167 = vadd.f32 %v61, %v166
  %168 = vdwg.mxu0
  %v169 = vtanh.pop %v105
  %v170 = vtanh.pop %v146
  %v171 = vtanh.pop %v108
  %v172 = vtanh.pop %v149
  %v173 = vtanh.pop %v111
  %v174 = vtanh.pop %v152
  %v175 = vtanh.pop %v114
  %v176 = vtanh.pop %v155
  %v177 = vtanh.pop %v117
  %v178 = vtanh.pop %v158
  %v179 = vtanh.pop %v120
  %v180 = vtanh.pop %v161
  %v181 = vtanh.pop %v123
  %v182 = vtanh.pop %v164
  %v183 = vtanh.pop %v126
  %v184 = vtanh.pop %v167
  %v185 = vld [vmem:[%s1 + $0x40] sm:$0xff]
  %v186 = vld [vmem:[%s1 + $0x48] sm:$0xff]
  %v187 = vld [vmem:[%s1 + $0x50] sm:$0xff]
  %v188 = vld [vmem:[%s1 + $0x58] sm:$0xff]
  %v189 = vld [vmem:[%s1 + $0x60] sm:$0xff]
  %v190 = vld [vmem:[%s1 + $0x68] sm:$0xff]
  %v191 = vld [vmem:[%s1 + $0x70] sm:$0xff]
  %v192 = vld [vmem:[%s1 + $0x78] sm:$0xff]
  %194 = vset.pattern.permute.xlu0 64
  %195 = vperm.xlu0 %194, %v185
  %v196 = vpop.permute.xlu0 %195
  %199 = vset.pattern.permute.xlu0 64
  %200 = vperm.xlu0 %199, %v186
  %v201 = vpop.permute.xlu0 %200
  %204 = vset.pattern.permute.xlu0 64
  %205 = vperm.xlu0 %204, %v187
  %v206 = vpop.permute.xlu0 %205
  %209 = vset.pattern.permute.xlu0 64
  %210 = vperm.xlu0 %209, %v188
  %v211 = vpop.permute.xlu0 %210
  %214 = vset.pattern.permute.xlu0 64
  %215 = vperm.xlu0 %214, %v189
  %v216 = vpop.permute.xlu0 %215
  %219 = vset.pattern.permute.xlu0 64
  %220 = vperm.xlu0 %219, %v190
  %v221 = vpop.permute.xlu0 %220
  %224 = vset.pattern.permute.xlu0 64
  %225 = vperm.xlu0 %224, %v191
  %v226 = vpop.permute.xlu0 %225
  %229 = vset.pattern.permute.xlu0 64
  %230 = vperm.xlu0 %229, %v192
  %v231 = vpop.permute.xlu0 %230
  %vm233 = vcmask 523264
  %v234 = vsel %vm233, %v185, 0
  %v236 = vsel %vm233, %v186, 0
  %v238 = vsel %vm233, %v187, 0
  %v240 = vsel %vm233, %v188, 0
  %v242 = vsel %vm233, %v189, 0
  %v244 = vsel %vm233, %v190, 0
  %v246 = vsel %vm233, %v191, 0
  %v248 = vsel %vm233, %v192, 0
  %250 = vmatpush.msra.mxu0 0.0
  %251 = vmatpush.msra.mxu0 0.0
  %252 = vmatpush.msra.mxu0 0.0
  %253 = vmatpush.msra.mxu0 0.0
  %254 = vmatpush.msra.mxu0 0.0
  %255 = vmatpush.msra.mxu0 0.0
  %256 = vmatpush.msra.mxu0 0.0
  %257 = vmatpush.msra.mxu0 0.0
  %258 = vmatpush.msra.mxu0 %v183
  %259 = vmatpush.msra.mxu0 %v181
  %260 = vmatpush.msra.mxu0 %v179
  %261 = vmatpush.msra.mxu0 %v177
  %262 = vmatpush.msra.mxu0 %v175
  %263 = vmatpush.msra.mxu0 %v173
  %264 = vmatpush.msra.mxu0 %v171
  %265 = vmatpush.msra.mxu0 %v169
  %266 = vmatmul.f32.gmra.mxu0 %v234
  %v267 = vpop.f32.mrf.mxu0
  %v268 = vadd.f32 %v196, %v267
  %269 = vmatmul.f32.gmra.mxu0 %v236
  %v270 = vpop.f32.mrf.mxu0
  %v271 = vadd.f32 %v201, %v270
  %272 = vmatmul.f32.gmra.mxu0 %v238
  %v273 = vpop.f32.mrf.mxu0
  %v274 = vadd.f32 %v206, %v273
  %275 = vmatmul.f32.gmra.mxu0 %v240
  %v276 = vpop.f32.mrf.mxu0
  %v277 = vadd.f32 %v211, %v276
  %278 = vmatmul.f32.gmra.mxu0 %v242
  %v279 = vpop.f32.mrf.mxu0
  %v280 = vadd.f32 %v216, %v279
  %281 = vmatmul.f32.gmra.mxu0 %v244
  %v282 = vpop.f32.mrf.mxu0
  %v283 = vadd.f32 %v221, %v282
  %284 = vmatmul.f32.gmra.mxu0 %v246
  %v285 = vpop.f32.mrf.mxu0
  %v286 = vadd.f32 %v226, %v285
  %287 = vmatmul.f32.gmra.mxu0 %v248
  %v288 = vpop.f32.mrf.mxu0
  %v289 = vadd.f32 %v231, %v288
  %290 = vdwg.mxu0
  %291 = vmatpush.msra.mxu0 0.0
  %292 = vmatpush.msra.mxu0 0.0
  %293 = vmatpush.msra.mxu0 0.0
  %294 = vmatpush.msra.mxu0 0.0
  %295 = vmatpush.msra.mxu0 0.0
  %296 = vmatpush.msra.mxu0 0.0
  %297 = vmatpush.msra.mxu0 0.0
  %298 = vmatpush.msra.mxu0 0.0
  %299 = vmatpush.msra.mxu0 %v184
  %300 = vmatpush.msra.mxu0 %v182
  %301 = vmatpush.msra.mxu0 %v180
  %302 = vmatpush.msra.mxu0 %v178
  %303 = vmatpush.msra.mxu0 %v176
  %304 = vmatpush.msra.mxu0 %v174
  %305 = vmatpush.msra.mxu0 %v172
  %306 = vmatpush.msra.mxu0 %v170
  %307 = vmatmul.f32.gmra.mxu0 %v234
  %v308 = vpop.f32.mrf.mxu0
  %v309 = vadd.f32 %v196, %v308
  %310 = vmatmul.f32.gmra.mxu0 %v236
  %v311 = vpop.f32.mrf.mxu0
  %v312 = vadd.f32 %v201, %v311
  %313 = vmatmul.f32.gmra.mxu0 %v238
  %v314 = vpop.f32.mrf.mxu0
  %v315 = vadd.f32 %v206, %v314
  %316 = vmatmul.f32.gmra.mxu0 %v240
  %v317 = vpop.f32.mrf.mxu0
  %v318 = vadd.f32 %v211, %v317
  %319 = vmatmul.f32.gmra.mxu0 %v242
  %v320 = vpop.f32.mrf.mxu0
  %v321 = vadd.f32 %v216, %v320
  %322 = vmatmul.f32.gmra.mxu0 %v244
  %v323 = vpop.f32.mrf.mxu0
  %v324 = vadd.f32 %v221, %v323
  %325 = vmatmul.f32.gmra.mxu0 %v246
  %v326 = vpop.f32.mrf.mxu0
  %v327 = vadd.f32 %v226, %v326
  %328 = vmatmul.f32.gmra.mxu0 %v248
  %v329 = vpop.f32.mrf.mxu0
  %v330 = vadd.f32 %v231, %v329
  %331 = vdwg.mxu0
  %v332 = vmul.f32 %v268, %v280
  %v333 = vmul.f32 %v309, %v321
  %v334 = vmul.f32 %v271, %v283
  %v335 = vmul.f32 %v312, %v324
  %v336 = vmul.f32 %v274, %v286
  %v337 = vmul.f32 %v315, %v327
  %v338 = vmul.f32 %v277, %v289
  %v339 = vmul.f32 %v318, %v330
  %v340 = vld [vmem:[%s1 + $0x80] sm:$0xff]
  %v341 = vld [vmem:[%s1 + $0x88] sm:$0xff]
  %v342 = vld [vmem:[%s1 + $0x90] sm:$0xff]
  %v343 = vld [vmem:[%s1 + $0x98] sm:$0xff]
  %v344 = vld [vmem:[%s1 + $0xa0] sm:$0xff]
  %346 = vset.pattern.permute.xlu0 64
  %347 = vperm.xlu0 %346, %v340
  %v348 = vpop.permute.xlu0 %347
  %351 = vset.pattern.permute.xlu0 64
  %352 = vperm.xlu0 %351, %v341
  %v353 = vpop.permute.xlu0 %352
  %356 = vset.pattern.permute.xlu0 64
  %357 = vperm.xlu0 %356, %v342
  %v358 = vpop.permute.xlu0 %357
  %361 = vset.pattern.permute.xlu0 64
  %362 = vperm.xlu0 %361, %v343
  %v363 = vpop.permute.xlu0 %362
  %366 = vset.pattern.permute.xlu0 64
  %367 = vperm.xlu0 %366, %v344
  %v368 = vpop.permute.xlu0 %367
  %vm370 = vcmask 261120
  %v371 = vsel %vm370, %v340, 0
  %v373 = vsel %vm370, %v341, 0
  %v375 = vsel %vm370, %v342, 0
  %v377 = vsel %vm370, %v343, 0
  %v379 = vsel %vm370, %v344, 0
  %381 = vmatpush.msra.mxu0 0.0
  %382 = vmatpush.msra.mxu0 0.0
  %383 = vmatpush.msra.mxu0 0.0
  %384 = vmatpush.msra.mxu0 0.0
  %385 = vmatpush.msra.mxu0 0.0
  %386 = vmatpush.msra.mxu0 0.0
  %387 = vmatpush.msra.mxu0 0.0
  %388 = vmatpush.msra.mxu0 0.0
  %389 = vmatpush.msra.mxu0 0.0
  %390 = vmatpush.msra.mxu0 0.0
  %391 = vmatpush.msra.mxu0 0.0
  %392 = vmatpush.msra.mxu0 0.0
  %393 = vmatpush.msra.mxu0 %v338
  %394 = vmatpush.msra.mxu0 %v336
  %395 = vmatpush.msra.mxu0 %v334
  %396 = vmatpush.msra.mxu0 %v332
  %397 = vmatmul.f32.gmra.mxu0 %v371
  %v398 = vpop.f32.mrf.mxu0
  %v399 = vadd.f32 %v348, %v398
  %400 = vmatmul.f32.gmra.mxu0 %v373
  %v401 = vpop.f32.mrf.mxu0
  %v402 = vadd.f32 %v353, %v401
  %403 = vmatmul.f32.gmra.mxu0 %v375
  %v404 = vpop.f32.mrf.mxu0
  %v405 = vadd.f32 %v358, %v404
  %406 = vmatmul.f32.gmra.mxu0 %v377
  %v407 = vpop.f32.mrf.mxu0
  %v408 = vadd.f32 %v363, %v407
  %409 = vmatmul.f32.gmra.mxu0 %v379
  %v410 = vpop.f32.mrf.mxu0
  %v411 = vadd.f32 %v368, %v410
  %412 = vdwg.mxu0
  %413 = vmatpush.msra.mxu0 0.0
  %414 = vmatpush.msra.mxu0 0.0
  %415 = vmatpush.msra.mxu0 0.0
  %416 = vmatpush.msra.mxu0 0.0
  %417 = vmatpush.msra.mxu0 0.0
  %418 = vmatpush.msra.mxu0 0.0
  %419 = vmatpush.msra.mxu0 0.0
  %420 = vmatpush.msra.mxu0 0.0
  %421 = vmatpush.msra.mxu0 0.0
  %422 = vmatpush.msra.mxu0 0.0
  %423 = vmatpush.msra.mxu0 0.0
  %424 = vmatpush.msra.mxu0 0.0
  %425 = vmatpush.msra.mxu0 %v339
  %426 = vmatpush.msra.mxu0 %v337
  %427 = vmatpush.msra.mxu0 %v335
  %428 = vmatpush.msra.mxu0 %v333
  %429 = vmatmul.f32.gmra.mxu0 %v371
  %v430 = vpop.f32.mrf.mxu0
  %v431 = vadd.f32 %v348, %v430
  %432 = vmatmul.f32.gmra.mxu0 %v373
  %v433 = vpop.f32.mrf.mxu0
  %v434 = vadd.f32 %v353, %v433
  %435 = vmatmul.f32.gmra.mxu0 %v375
  %v436 = vpop.f32.mrf.mxu0
  %v437 = vadd.f32 %v358, %v436
  %438 = vmatmul.f32.gmra.mxu0 %v377
  %v439 = vpop.f32.mrf.mxu0
  %v440 = vadd.f32 %v363, %v439
  %441 = vmatmul.f32.gmra.mxu0 %v379
  %v442 = vpop.f32.mrf.mxu0
  %v443 = vadd.f32 %v368, %v442
  %444 = vdwg.mxu0
  %445 = vst [vmem:[%s2] sm:$0xff] %v399
  %446 = vst [vmem:[%s2 + $0x8] sm:$0xff] %v431
  %v447 = vtanh.pop %v402
  %v448 = vtanh.pop %v434
  %v449 = vtanh.pop %v405
  %v450 = vtanh.pop %v437
  %v451 = vtanh.pop %v408
  %v452 = vtanh.pop %v440
  %v453 = vtanh.pop %v411
  %v454 = vtanh.pop %v443
  %v455 = vld [vmem:[%s1 + $0xa8] sm:$0xff]
  %457 = vset.pattern.permute.xlu0 64
  %458 = vperm.xlu0 %457, %v455
  %v459 = vpop.permute.xlu0 %458
  %v461 = vsel %vm370, %v455, 0
  %463 = vmatpush.msra.mxu0 0.0
  %464 = vmatpush.msra.mxu0 0.0
  %465 = vmatpush.msra.mxu0 0.0
  %466 = vmatpush.msra.mxu0 0.0
  %467 = vmatpush.msra.mxu0 0.0
  %468 = vmatpush.msra.mxu0 0.0
  %469 = vmatpush.msra.mxu0 0.0
  %470 = vmatpush.msra.mxu0 0.0
  %471 = vmatpush.msra.mxu0 0.0
  %472 = vmatpush.msra.mxu0 0.0
  %473 = vmatpush.msra.mxu0 0.0
  %474 = vmatpush.msra.mxu0 0.0
  %475 = vmatpush.msra.mxu0 %v453
  %476 = vmatpush.msra.mxu0 %v451
  %477 = vmatpush.msra.mxu0 %v449
  %478 = vmatpush.msra.mxu0 %v447
  %479 = vmatmul.f32.gmra.mxu0 %v461
  %v480 = vpop.f32.mrf.mxu0
  %v481 = vadd.f32 %v459, %v480
  %482 = vdwg.mxu0
  %483 = vmatpush.msra.mxu0 0.0
  %484 = vmatpush.msra.mxu0 0.0
  %485 = vmatpush.msra.mxu0 0.0
  %486 = vmatpush.msra.mxu0 0.0
  %487 = vmatpush.msra.mxu0 0.0
  %488 = vmatpush.msra.mxu0 0.0
  %489 = vmatpush.msra.mxu0 0.0
  %490 = vmatpush.msra.mxu0 0.0
  %491 = vmatpush.msra.mxu0 0.0
  %492 = vmatpush.msra.mxu0 0.0
  %493 = vmatpush.msra.mxu0 0.0
  %494 = vmatpush.msra.mxu0 0.0
  %495 = vmatpush.msra.mxu0 %v454
  %496 = vmatpush.msra.mxu0 %v452
  %497 = vmatpush.msra.mxu0 %v450
  %498 = vmatpush.msra.mxu0 %v448
  %499 = vmatmul.f32.gmra.mxu0 %v461
  %v500 = vpop.f32.mrf.mxu0
  %v501 = vadd.f32 %v459, %v500
  %502 = vdwg.mxu0
  %503 = vst [vmem:[%s2 + $0x10] sm:$0xff] %v481
  %504 = vst [vmem:[%s2 + $0x18] sm:$0xff] %v501
  // Predicated region
  $region10: #{predictor_forward.1} parent=0 // pred_check
    _
  $region11: #{predictor_forward.1} parent=0 // pred_check_branch
    %506 = sbr.rel (0) target = $region13
  $region12: #{predictor_forward.1} parent=0 // pred_region
    _
  $region13: #{predictor_forward.1} parent=0 // pred_fallthru
    _
  // Predicated region
  $region14: #{predictor_forward.1} parent=0 // pred_check
    _
  $region15: #{predictor_forward.1} parent=0 // pred_check_branch
    %508 = sbr.rel (0) target = $region17
  $region16: #{predictor_forward.1} parent=0 // pred_region
    _
  $region17: #{predictor_forward.1} parent=0 // pred_fallthru
    _

</llo_original>
